<compile_context>
chip_gen: v7x
topology: tpu7x:2x2x1
jax: 0.10.0
libtpu: 0.0.40
codegen_flags: <defaults>
</compile_context>

<pallas_src>
import jax
import jax.numpy as jnp
from jax.experimental import pallas as pl
from jax.experimental.pallas import tpu as pltpu

LANE = 128
SUBLANE = 8
MAX_TILE_B = 2048        # rows per grid step; ~10 MiB of VMEM at this size
SMALL_BATCH = 256        # below this, plain XLA beats the custom kernel
VMEM_LIMIT_BYTES = 48 * 1024 * 1024   # > v5e's 16 MiB / v6e's 32 MiB defaults


def _round_up(x, m):
    return (x + m - 1) // m * m


# -----------------------------------------------------------------------------
# Kernel
# -----------------------------------------------------------------------------
def mlp_kernel(x_ref,
               w1_ref, b1_ref,
               w2_ref, b2_ref,
               w3_ref, b3_ref,
               w4_ref, b4_ref,
               o_ref):
    """Fused 4-layer MLP forward on one (tile_b, f_in) batch tile.

    Matmuls run on the MXU with bf16 operands and f32 accumulation;
    bias-add / ReLU run on the VPU in f32 (safe on v5e, optimal elsewhere).
    Only the real num_classes output columns are stored.
    """
    x = x_ref[...].astype(jnp.bfloat16)

    h1 = jnp.dot(x, w1_ref[...], preferred_element_type=jnp.float32) + b1_ref[...]
    h1 = jnp.maximum(h1, 0.0).astype(jnp.bfloat16)

    h2 = jnp.dot(h1, w2_ref[...], preferred_element_type=jnp.float32) + b2_ref[...]
    h2 = jnp.maximum(h2, 0.0).astype(jnp.bfloat16)

    h3 = jnp.dot(h2, w3_ref[...], preferred_element_type=jnp.float32) + b3_ref[...]
    h3 = jnp.maximum(h3, 0.0).astype(jnp.bfloat16)

    out = jnp.dot(h3, w4_ref[...], preferred_element_type=jnp.float32) + b4_ref[...]
    # o_ref holds only the real (unpadded) logit columns.
    o_ref[...] = out[:, : o_ref.shape[1]].astype(o_ref.dtype)


# -----------------------------------------------------------------------------
# Parameter prep: pad feature dims to 128-lane multiples, weights -> bf16
# -----------------------------------------------------------------------------
def prepare_params(params):
    """Zero-pad layer widths to multiples of 128 and cast weights to bf16.

    Zero padding is exact: padded activation columns are ReLU(0)=0 and the
    corresponding (zero) weight rows contribute nothing downstream.
    """
    prepped = {}
    for i in range(1, 5):
        w = params[f"w{i}"]
        b = params[f"b{i}"]
        fan_in, fan_out = w.shape
        # layer 1 keeps the raw input width (it is the x block's last dim);
        # deeper layers' fan_in must match the previous padded fan_out.
        fi_p = fan_in if i == 1 else _round_up(fan_in, LANE)
        fo_p = _round_up(fan_out, LANE)
        w_p = jnp.zeros((fi_p, fo_p), jnp.float32).at[:fan_in, :fan_out].set(w)
        b_p = jnp.zeros((1, fo_p), jnp.float32).at[:, :fan_out].set(b)
        prepped[f"w{i}"] = w_p.astype(jnp.bfloat16)   # bf16 dot operands
        prepped[f"b{i}"] = b_p                        # bias stays f32
    return prepped


# -----------------------------------------------------------------------------
# Plain jnp path (same padded-bf16 math) — used for tiny batches / reference
# -----------------------------------------------------------------------------
def jnp_forward(x, prepped, num_classes):
    h = x.astype(jnp.bfloat16)
    h = jnp.dot(h, prepped["w1"], preferred_element_type=jnp.float32) + prepped["b1"]
    h = jnp.maximum(h, 0.0).astype(jnp.bfloat16)
    h = jnp.dot(h, prepped["w2"], preferred_element_type=jnp.float32) + prepped["b2"]
    h = jnp.maximum(h, 0.0).astype(jnp.bfloat16)
    h = jnp.dot(h, prepped["w3"], preferred_element_type=jnp.float32) + prepped["b3"]
    h = jnp.maximum(h, 0.0).astype(jnp.bfloat16)
    out = jnp.dot(h, prepped["w4"], preferred_element_type=jnp.float32) + prepped["b4"]
    return out[:, :num_classes]


# -----------------------------------------------------------------------------
# Wrapper
# -----------------------------------------------------------------------------
def neural_net_forward(x, prepped, num_classes, force_pallas=False):
    """x: (B, input_size) f32; returns (B, num_classes) f32 logits."""
    B, f_in = x.shape

    # Tiny batches: one microsecond-scale grid step; let XLA's fused path win.
    if B <= SMALL_BATCH and not force_pallas:
        return jnp_forward(x, prepped, num_classes)

    # Batch tile: multiple of 8 sublanes, capped at MAX_TILE_B, and sized so
    # the grid has >=2 steps whenever possible (v7x megacore sharding).
    tile_b = min(MAX_TILE_B, _round_up(pl.cdiv(B, 2), SUBLANE))
    grid = (pl.cdiv(B, tile_b),)   # ragged last block handled by Pallas

    def resident(shape):
        # Constant index map -> fetched once, stays VMEM-resident across tiles.
        return pl.BlockSpec(shape, lambda i: (0, 0))

    in_specs = [
        pl.BlockSpec((tile_b, f_in), lambda i: (i, 0)),           # x tile
        resident(prepped["w1"].shape), resident(prepped["b1"].shape),
        resident(prepped["w2"].shape), resident(prepped["b2"].shape),
        resident(prepped["w3"].shape), resident(prepped["b3"].shape),
        resident(prepped["w4"].shape), resident(prepped["b4"].shape),
    ]
    # Output block last dim == full array dim (num_classes) -> legal, and we
    # skip writing the padded logit columns entirely.
    out_specs = pl.BlockSpec((tile_b, num_classes), lambda i: (i, 0))

    flops = 2 * B * sum(
        prepped[f"w{i}"].shape[0] * prepped[f"w{i}"].shape[1] for i in range(1, 5)
    )
    bytes_accessed = int(
        x.size * x.dtype.itemsize
        + sum(v.size * v.dtype.itemsize for v in prepped.values())
        + B * num_classes * 4
    )

    out = pl.pallas_call(
        mlp_kernel,
        out_shape=jax.ShapeDtypeStruct((B, num_classes), jnp.float32),
        grid=grid,
        in_specs=in_specs,
        out_specs=out_specs,
        compiler_params=pltpu.CompilerParams(
            dimension_semantics=("parallel",),      # megacore sharding on v7x
            vmem_limit_bytes=VMEM_LIMIT_BYTES,      # covers tile_b up to 2048
        ),
        cost_estimate=pl.CostEstimate(
            flops=flops, transcendentals=0, bytes_accessed=bytes_accessed),
    )(x,
      prepped["w1"], prepped["b1"],
      prepped["w2"], prepped["b2"],
      prepped["w3"], prepped["b3"],
      prepped["w4"], prepped["b4"])

    return out


# -----------------------------------------------------------------------------
# Init + references
# -----------------------------------------------------------------------------
def init_params(key, input_size, num_classes):
    """Deterministic synthetic parameters (PyTorch-style uniform fan-in init)."""
    dims = [(input_size, 200), (200, 100), (100, 50), (50, num_classes)]
    params = {}
    for i, (fan_in, fan_out) in enumerate(dims, start=1):
        key, kw, kb = jax.random.split(key, 3)
        bound = 1.0 / (fan_in ** 0.5)
        params[f"w{i}"] = jax.random.uniform(
            kw, (fan_in, fan_out), jnp.float32, -bound, bound)
        params[f"b{i}"] = jax.random.uniform(
            kb, (1, fan_out), jnp.float32, -bound, bound)
    return params


def reference_forward_f32(x, params):
    """Pure-f32 JAX reference matching the PyTorch module."""
    h = jnp.maximum(x @ params["w1"] + params["b1"], 0.0)
    h = jnp.maximum(h @ params["w2"] + params["b2"], 0.0)
    h = jnp.maximum(h @ params["w3"] + params["b3"], 0.0)
    return h @ params["w4"] + params["b4"]


# -----------------------------------------------------------------------------
# Main
# -----------------------------------------------------------------------------
if __name__ == "__main__":
    input_size = 32
    num_classes = 10
    batch = 16   # small demo batch; force_pallas exercises a 2-step grid

    key = jax.random.PRNGKey(0)
    key, kx = jax.random.split(key)
    x = jax.random.normal(kx, (batch, input_size), jnp.float32)

    params = init_params(key, input_size, num_classes)
    prepped = prepare_params(params)

    out = neural_net_forward(x, prepped, num_classes, force_pallas=True)
    out = jax.block_until_ready(out)
    assert out.shape == (batch, num_classes)

    # Exact-math check against a JAX reference doing the same bf16/padded math.
    ref_bf16 = jnp_forward(x, prepped, num_classes)
    assert jnp.allclose(out, ref_bf16, atol=5e-3, rtol=5e-3), \
        "mismatch vs bf16 reference"

    # Semantic check against the full-f32 PyTorch-equivalent reference
    # (loose tolerance: bf16 dot operands intentionally diverge slightly).
    ref_f32 = reference_forward_f32(x, params)
    assert jnp.allclose(out, ref_f32, atol=1e-1, rtol=1e-1), \
        "mismatch vs f32 reference"

    print("KERNEL_OK")
</pallas_src>

<mosaic_0001>
module attributes {stable_mosaic.version = 11 : i64} {
  func.func @mlp_kernel(%arg0: i32, %arg1: memref<8x32xf32, #tpu.memory_space<vmem>>, %arg2: memref<32x256xbf16, #tpu.memory_space<vmem>>, %arg3: memref<1x256xf32, #tpu.memory_space<vmem>>, %arg4: memref<256x128xbf16, #tpu.memory_space<vmem>>, %arg5: memref<1x128xf32, #tpu.memory_space<vmem>>, %arg6: memref<128x128xbf16, #tpu.memory_space<vmem>>, %arg7: memref<1x128xf32, #tpu.memory_space<vmem>>, %arg8: memref<128x128xbf16, #tpu.memory_space<vmem>>, %arg9: memref<1x128xf32, #tpu.memory_space<vmem>>, %arg10: memref<8x10xf32, #tpu.memory_space<vmem>>) attributes {dimension_semantics = [#tpu.dimension_semantics<parallel>], iteration_bounds = array<i64: 2>, scalar_prefetch = 0 : i64, scratch_operands = 0 : i64, tpu.core_type = #tpu.core_type<tc>, window_params = [{transform_indices = @transform_0, window_bounds = array<i64: 8, 32>}, {pipeline_mode = #tpu.pipeline_mode<synchronous>, transform_indices = @transform_1, window_bounds = array<i64: 32, 256>}, {pipeline_mode = #tpu.pipeline_mode<synchronous>, transform_indices = @transform_2, window_bounds = array<i64: 1, 256>}, {pipeline_mode = #tpu.pipeline_mode<synchronous>, transform_indices = @transform_3, window_bounds = array<i64: 256, 128>}, {pipeline_mode = #tpu.pipeline_mode<synchronous>, transform_indices = @transform_4, window_bounds = array<i64: 1, 128>}, {pipeline_mode = #tpu.pipeline_mode<synchronous>, transform_indices = @transform_5, window_bounds = array<i64: 128, 128>}, {pipeline_mode = #tpu.pipeline_mode<synchronous>, transform_indices = @transform_6, window_bounds = array<i64: 1, 128>}, {pipeline_mode = #tpu.pipeline_mode<synchronous>, transform_indices = @transform_7, window_bounds = array<i64: 128, 128>}, {pipeline_mode = #tpu.pipeline_mode<synchronous>, transform_indices = @transform_8, window_bounds = array<i64: 1, 128>}, {transform_indices = @transform_9, window_bounds = array<i64: 8, 10>}]} {
    %c0 = arith.constant 0 : index
    %c0_0 = arith.constant 0 : index
    %0 = vector.load %arg1[%c0, %c0_0] : memref<8x32xf32, #tpu.memory_space<vmem>>, vector<8x32xf32>
    %1 = arith.truncf %0 : vector<8x32xf32> to vector<8x32xbf16>
    %c0_1 = arith.constant 0 : index
    %c0_2 = arith.constant 0 : index
    %2 = vector.load %arg2[%c0_1, %c0_2] : memref<32x256xbf16, #tpu.memory_space<vmem>>, vector<32x256xbf16>
    %cst = arith.constant dense<0.000000e+00> : vector<8x256xf32>
    %3 = tpu.matmul %1, %2, %cst {dimension_numbers = #tpu.dot_dimension_numbers<[1], [0], [0], [1], [0, 0, 1, 1], [], []>} : vector<8x32xbf16>, vector<32x256xbf16>, vector<8x256xf32> -> vector<8x256xf32>
    %c0_3 = arith.constant 0 : index
    %c0_4 = arith.constant 0 : index
    %4 = vector.load %arg3[%c0_3, %c0_4] : memref<1x256xf32, #tpu.memory_space<vmem>>, vector<1x256xf32>
    %5 = vector.broadcast %4 : vector<1x256xf32> to vector<8x256xf32>
    %6 = arith.addf %3, %5 : vector<8x256xf32>
    %cst_5 = arith.constant 0.000000e+00 : f32
    %7 = vector.broadcast %cst_5 : f32 to vector<8x256xf32>
    %8 = arith.maximumf %6, %7 : vector<8x256xf32>
    %9 = arith.truncf %8 : vector<8x256xf32> to vector<8x256xbf16>
    %c0_6 = arith.constant 0 : index
    %c0_7 = arith.constant 0 : index
    %10 = vector.load %arg4[%c0_6, %c0_7] : memref<256x128xbf16, #tpu.memory_space<vmem>>, vector<256x128xbf16>
    %cst_8 = arith.constant dense<0.000000e+00> : vector<8x128xf32>
    %11 = tpu.matmul %9, %10, %cst_8 {dimension_numbers = #tpu.dot_dimension_numbers<[1], [0], [0], [1], [0, 0, 1, 1], [], []>} : vector<8x256xbf16>, vector<256x128xbf16>, vector<8x128xf32> -> vector<8x128xf32>
    %c0_9 = arith.constant 0 : index
    %c0_10 = arith.constant 0 : index
    %12 = vector.load %arg5[%c0_9, %c0_10] : memref<1x128xf32, #tpu.memory_space<vmem>>, vector<1x128xf32>
    %13 = vector.broadcast %12 : vector<1x128xf32> to vector<8x128xf32>
    %14 = arith.addf %11, %13 : vector<8x128xf32>
    %cst_11 = arith.constant 0.000000e+00 : f32
    %15 = vector.broadcast %cst_11 : f32 to vector<8x128xf32>
    %16 = arith.maximumf %14, %15 : vector<8x128xf32>
    %17 = arith.truncf %16 : vector<8x128xf32> to vector<8x128xbf16>
    %c0_12 = arith.constant 0 : index
    %c0_13 = arith.constant 0 : index
    %18 = vector.load %arg6[%c0_12, %c0_13] : memref<128x128xbf16, #tpu.memory_space<vmem>>, vector<128x128xbf16>
    %cst_14 = arith.constant dense<0.000000e+00> : vector<8x128xf32>
    %19 = tpu.matmul %17, %18, %cst_14 {dimension_numbers = #tpu.dot_dimension_numbers<[1], [0], [0], [1], [0, 0, 1, 1], [], []>} : vector<8x128xbf16>, vector<128x128xbf16>, vector<8x128xf32> -> vector<8x128xf32>
    %c0_15 = arith.constant 0 : index
    %c0_16 = arith.constant 0 : index
    %20 = vector.load %arg7[%c0_15, %c0_16] : memref<1x128xf32, #tpu.memory_space<vmem>>, vector<1x128xf32>
    %21 = vector.broadcast %20 : vector<1x128xf32> to vector<8x128xf32>
    %22 = arith.addf %19, %21 : vector<8x128xf32>
    %cst_17 = arith.constant 0.000000e+00 : f32
    %23 = vector.broadcast %cst_17 : f32 to vector<8x128xf32>
    %24 = arith.maximumf %22, %23 : vector<8x128xf32>
    %25 = arith.truncf %24 : vector<8x128xf32> to vector<8x128xbf16>
    %c0_18 = arith.constant 0 : index
    %c0_19 = arith.constant 0 : index
    %26 = vector.load %arg8[%c0_18, %c0_19] : memref<128x128xbf16, #tpu.memory_space<vmem>>, vector<128x128xbf16>
    %cst_20 = arith.constant dense<0.000000e+00> : vector<8x128xf32>
    %27 = tpu.matmul %25, %26, %cst_20 {dimension_numbers = #tpu.dot_dimension_numbers<[1], [0], [0], [1], [0, 0, 1, 1], [], []>} : vector<8x128xbf16>, vector<128x128xbf16>, vector<8x128xf32> -> vector<8x128xf32>
    %c0_21 = arith.constant 0 : index
    %c0_22 = arith.constant 0 : index
    %28 = vector.load %arg9[%c0_21, %c0_22] : memref<1x128xf32, #tpu.memory_space<vmem>>, vector<1x128xf32>
    %29 = vector.broadcast %28 : vector<1x128xf32> to vector<8x128xf32>
    %30 = arith.addf %27, %29 : vector<8x128xf32>
    %31 = vector.extract_strided_slice %30 {offsets = [0, 0], sizes = [8, 10], strides = [1, 1]} : vector<8x128xf32> to vector<8x10xf32>
    %c0_23 = arith.constant 0 : index
    %c0_24 = arith.constant 0 : index
    %32 = vector.load %arg10[%c0_23, %c0_24] : memref<8x10xf32, #tpu.memory_space<vmem>>, vector<8x10xf32>
    tpu.vector_store %arg10[%c0_23, %c0_24], %31 {strides = array<i32>} : memref<8x10xf32, #tpu.memory_space<vmem>>, vector<8x10xf32>,
    return
  }
  func.func @transform_0(%arg0: i32) -> (i32, i32) {
    %c0_i32 = arith.constant 0 : i32
    %c0_i32_0 = arith.constant 0 : i32
    return %arg0, %c0_i32 : i32, i32
  }
  func.func @transform_1(%arg0: i32) -> (i32, i32) {
    %c0_i32 = arith.constant 0 : i32
    %c0_i32_0 = arith.constant 0 : i32
    %c0_i32_1 = arith.constant 0 : i32
    return %c0_i32, %c0_i32_0 : i32, i32
  }
  func.func @transform_2(%arg0: i32) -> (i32, i32) {
    %c0_i32 = arith.constant 0 : i32
    %c0_i32_0 = arith.constant 0 : i32
    %c0_i32_1 = arith.constant 0 : i32
    return %c0_i32, %c0_i32_0 : i32, i32
  }
  func.func @transform_3(%arg0: i32) -> (i32, i32) {
    %c0_i32 = arith.constant 0 : i32
    %c0_i32_0 = arith.constant 0 : i32
    %c0_i32_1 = arith.constant 0 : i32
    return %c0_i32, %c0_i32_0 : i32, i32
  }
  func.func @transform_4(%arg0: i32) -> (i32, i32) {
    %c0_i32 = arith.constant 0 : i32
    %c0_i32_0 = arith.constant 0 : i32
    %c0_i32_1 = arith.constant 0 : i32
    return %c0_i32, %c0_i32_0 : i32, i32
  }
  func.func @transform_5(%arg0: i32) -> (i32, i32) {
    %c0_i32 = arith.constant 0 : i32
    %c0_i32_0 = arith.constant 0 : i32
    %c0_i32_1 = arith.constant 0 : i32
    return %c0_i32, %c0_i32_0 : i32, i32
  }
  func.func @transform_6(%arg0: i32) -> (i32, i32) {
    %c0_i32 = arith.constant 0 : i32
    %c0_i32_0 = arith.constant 0 : i32
    %c0_i32_1 = arith.constant 0 : i32
    return %c0_i32, %c0_i32_0 : i32, i32
  }
  func.func @transform_7(%arg0: i32) -> (i32, i32) {
    %c0_i32 = arith.constant 0 : i32
    %c0_i32_0 = arith.constant 0 : i32
    %c0_i32_1 = arith.constant 0 : i32
    return %c0_i32, %c0_i32_0 : i32, i32
  }
  func.func @transform_8(%arg0: i32) -> (i32, i32) {
    %c0_i32 = arith.constant 0 : i32
    %c0_i32_0 = arith.constant 0 : i32
    %c0_i32_1 = arith.constant 0 : i32
    return %c0_i32, %c0_i32_0 : i32, i32
  }
  func.func @transform_9(%arg0: i32) -> (i32, i32) {
    %c0_i32 = arith.constant 0 : i32
    %c0_i32_0 = arith.constant 0 : i32
    return %arg0, %c0_i32 : i32, i32
  }
}

</mosaic_0001>

<llo_original>
// kernel: tpu_custom_call.1
$region0: #{tpu_custom_call.1}
  #allocation0 [shape = 'u32[]', space=smem, size = 0x4, offset = 0x4, fixed_abs, tag = 'smem constant byte address 0x4 - core index']
  #allocation1 [shape = 'u32[144,128]{1,0:T(1,128)}', space=vmem, size = 0x12000, scoped, tag = 'internal scratch']
  %s0 = inlined_call_operand.hbm [shape: f32[16,32], index: 0, kind: input, shape index: {}]
  %s1 = inlined_call_operand.hbm [shape: bf16[32,256], index: 1, kind: input, shape index: {}]
  %s2 = inlined_call_operand.vmem [shape: f32[1,256], index: 2, kind: input, shape index: {}]
  %s3 = inlined_call_operand.hbm [shape: bf16[256,128], index: 3, kind: input, shape index: {}]
  %s4 = inlined_call_operand.vmem [shape: f32[1,128], index: 4, kind: input, shape index: {}]
  %s5 = inlined_call_operand.hbm [shape: bf16[128,128], index: 5, kind: input, shape index: {}]
  %s6 = inlined_call_operand.vmem [shape: f32[1,128], index: 6, kind: input, shape index: {}]
  %s7 = inlined_call_operand.hbm [shape: bf16[128,128], index: 7, kind: input, shape index: {}]
  %s8 = inlined_call_operand.vmem [shape: f32[1,128], index: 8, kind: input, shape index: {}]
  %s9 = inlined_call_operand.hbm [shape: f32[16,10], index: 9, kind: output, shape index: {}]
  %s10 = sld [smem:[#allocation0]]
  $region89: #{tpu_custom_call.1} parent=0
    _
  %s12 = ssub.s32 1, %s10
  %s13 = scalar_select 0, %s12, %s10
  $region1: #{tpu_custom_call.1} parent=0
    #allocation2 [shape = 'u8[8192]{0}', space=vmem, size = 0x2000, scoped, tag = 'input window, operand 0']
    #allocation3 [shape = 's32[2]{0}', space=sflag, size = 0x8, scoped, tag = 'scoped memory for tpu_custom_call.1']
    #allocation4 [shape = 's32[2]{0}', space=sflag, size = 0x8, scoped, tag = 'scoped memory for tpu_custom_call.1']
    #allocation5 [shape = 'u8[16384]{0}', space=vmem, size = 0x4000, scoped, tag = 'input window, operand 1, single buffered']
    #allocation6 [shape = 's32[1]{0}', space=sflag, size = 0x4, scoped, tag = 'scoped memory for tpu_custom_call.1']
    #allocation7 [shape = 'u8[65536]{0}', space=vmem, size = 0x10000, scoped, tag = 'input window, operand 3, single buffered']
    #allocation8 [shape = 'u8[32768]{0}', space=vmem, size = 0x8000, scoped, tag = 'input window, operand 5, single buffered']
    #allocation9 [shape = 's32[1]{0}', space=sflag, size = 0x4, scoped, tag = 'scoped memory for tpu_custom_call.1']
    #allocation10 [shape = 'u8[32768]{0}', space=vmem, size = 0x8000, scoped, tag = 'input window, operand 7, single buffered']
    #allocation11 [shape = 'u8[8192]{0}', space=vmem, size = 0x2000, scoped, tag = 'output window, operand 0']
    %14 = vsyncpa [#allocation3], 0
    %s15 = scalar_lea.sflag [#allocation3], 1
    %16 = vsyncpa %s15, 0
    %17 = vsyncpa [#allocation6], 0
    %18 = vsyncpa [#allocation9], 0
    %19 = vsyncpa [#allocation4], 0
    %s20 = scalar_lea.sflag [#allocation4], 1
    %21 = vsyncpa %s20, 0
    loop: start=0, step=1, limit=4
    $region2: #{tpu_custom_call.1} parent=1 // loop_pre_header
      _
    $region3: #{tpu_custom_call.1} parent=1 // loop_header
      %s23 = sphi 0, %s27
      %p24 = scmp.ge.s32.totalorder %s23, 4
      %s33 = sphi 0, %s35
      %s36 = sphi 0, %s33
      %s37 = sphi 0, %s36
      %s53 = sphi 0, %s37
      %s57 = sphi 0, %s57
      %s59 = sphi 0, %s57
      %s60 = sphi 0, %s59
      %s74 = sphi 0, %s60
      %s78 = sphi 0, %s78
      %s80 = sphi 0, %s78
      %s81 = sphi 0, %s80
      %s95 = sphi 0, %s81
      %s99 = sphi 0, %s99
      %s101 = sphi 0, %s99
      %s102 = sphi 0, %s101
      %s116 = sphi 0, %s102
      %s120 = sphi 0, %s120
      %s122 = sphi 0, %s120
      %s123 = sphi 0, %s122
      %s137 = sphi 0, %s123
      %s141 = sphi 0, %s141
      %s143 = sphi 0, %s141
      %s144 = sphi 0, %s143
      %s158 = sphi 0, %s144
      %s162 = sphi 0, %s162
      %s164 = sphi 0, %s162
      %s165 = sphi 0, %s164
      %s179 = sphi 0, %s165
      %s183 = sphi 0, %s183
      %s185 = sphi 0, %s183
      %s186 = sphi 0, %s185
      %s200 = sphi 0, %s186
      %s204 = sphi 0, %s204
      %s206 = sphi 0, %s204
      %s207 = sphi 0, %s206
      %s221 = sphi 0, %s207
      %s227 = sphi 0, %s229
      %s230 = sphi 0, %s227
      %s231 = sphi 0, %s230
      %s247 = sphi 0, %s231
    $region4: #{tpu_custom_call.1} parent=1 // loop_header_branch
      %26 = sbr.rel (%p24) target = $region8
    $region5: #{tpu_custom_call.1} parent=1 // loop_body
      %s28 = ssub.s32 %s23, 1
      %s29 = ssub.s32 %s23, 2
      %s30 = sadd.s32 %s23, 1
      %s31 = ssub.s32 %s23, %s30
      %p32 = scmp.eq.s32.totalorder %s31, 0
      %s34 = sadd.s32 %s33, 1
      %s35 = scalar_select %p32, %s33, %s34
      %p38 = pneg %p32
      %p39 = scmp.eq.s32.totalorder %s23, 1
      %p40 = por %p38, %p39
      %p41 = scmp.ne.s32.totalorder %s33, %s36
      %p42 = scmp.eq.s32.totalorder %s23, 0
      %p43 = por %p41, %p42
      %p44 = scmp.ne.s32.totalorder %s33, %s36
      %p45 = scmp.eq.s32.totalorder %s28, 1
      %p46 = por %p44, %p45
      %p47 = scmp.ne.s32.totalorder %s36, %s37
      %p48 = scmp.eq.s32.totalorder %s28, 0
      %p49 = por %p47, %p48
      %p50 = scmp.ne.s32.totalorder %s36, %s37
      %p51 = scmp.eq.s32.totalorder %s29, 1
      %p52 = por %p50, %p51
      %p54 = scmp.ne.s32.totalorder %s37, %s53
      %p55 = scmp.eq.s32.totalorder %s29, 0
      %p56 = por %p54, %p55
      %s58 = sadd.s32 %s57, 1
      %p61 = scmp.eq.s32.totalorder %s23, 1
      %p62 = scmp.ne.s32.totalorder %s57, %s59
      %p63 = scmp.eq.s32.totalorder %s23, 0
      %p64 = por %p62, %p63
      %p65 = scmp.ne.s32.totalorder %s57, %s59
      %p66 = scmp.eq.s32.totalorder %s28, 1
      %p67 = por %p65, %p66
      %p68 = scmp.ne.s32.totalorder %s59, %s60
      %p69 = scmp.eq.s32.totalorder %s28, 0
      %p70 = por %p68, %p69
      %p71 = scmp.ne.s32.totalorder %s59, %s60
      %p72 = scmp.eq.s32.totalorder %s29, 1
      %p73 = por %p71, %p72
      %p75 = scmp.ne.s32.totalorder %s60, %s74
      %p76 = scmp.eq.s32.totalorder %s29, 0
      %p77 = por %p75, %p76
      %s79 = sadd.s32 %s78, 1
      %p82 = scmp.eq.s32.totalorder %s23, 1
      %p83 = scmp.ne.s32.totalorder %s78, %s80
      %p84 = scmp.eq.s32.totalorder %s23, 0
      %p85 = por %p83, %p84
      %p86 = scmp.ne.s32.totalorder %s78, %s80
      %p87 = scmp.eq.s32.totalorder %s28, 1
      %p88 = por %p86, %p87
      %p89 = scmp.ne.s32.totalorder %s80, %s81
      %p90 = scmp.eq.s32.totalorder %s28, 0
      %p91 = por %p89, %p90
      %p92 = scmp.ne.s32.totalorder %s80, %s81
      %p93 = scmp.eq.s32.totalorder %s29, 1
      %p94 = por %p92, %p93
      %p96 = scmp.ne.s32.totalorder %s81, %s95
      %p97 = scmp.eq.s32.totalorder %s29, 0
      %p98 = por %p96, %p97
      %s100 = sadd.s32 %s99, 1
      %p103 = scmp.eq.s32.totalorder %s23, 1
      %p104 = scmp.ne.s32.totalorder %s99, %s101
      %p105 = scmp.eq.s32.totalorder %s23, 0
      %p106 = por %p104, %p105
      %p107 = scmp.ne.s32.totalorder %s99, %s101
      %p108 = scmp.eq.s32.totalorder %s28, 1
      %p109 = por %p107, %p108
      %p110 = scmp.ne.s32.totalorder %s101, %s102
      %p111 = scmp.eq.s32.totalorder %s28, 0
      %p112 = por %p110, %p111
      %p113 = scmp.ne.s32.totalorder %s101, %s102
      %p114 = scmp.eq.s32.totalorder %s29, 1
      %p115 = por %p113, %p114
      %p117 = scmp.ne.s32.totalorder %s102, %s116
      %p118 = scmp.eq.s32.totalorder %s29, 0
      %p119 = por %p117, %p118
      %s121 = sadd.s32 %s120, 1
      %p124 = scmp.eq.s32.totalorder %s23, 1
      %p125 = scmp.ne.s32.totalorder %s120, %s122
      %p126 = scmp.eq.s32.totalorder %s23, 0
      %p127 = por %p125, %p126
      %p128 = scmp.ne.s32.totalorder %s120, %s122
      %p129 = scmp.eq.s32.totalorder %s28, 1
      %p130 = por %p128, %p129
      %p131 = scmp.ne.s32.totalorder %s122, %s123
      %p132 = scmp.eq.s32.totalorder %s28, 0
      %p133 = por %p131, %p132
      %p134 = scmp.ne.s32.totalorder %s122, %s123
      %p135 = scmp.eq.s32.totalorder %s29, 1
      %p136 = por %p134, %p135
      %p138 = scmp.ne.s32.totalorder %s123, %s137
      %p139 = scmp.eq.s32.totalorder %s29, 0
      %p140 = por %p138, %p139
      %s142 = sadd.s32 %s141, 1
      %p145 = scmp.eq.s32.totalorder %s23, 1
      %p146 = scmp.ne.s32.totalorder %s141, %s143
      %p147 = scmp.eq.s32.totalorder %s23, 0
      %p148 = por %p146, %p147
      %p149 = scmp.ne.s32.totalorder %s141, %s143
      %p150 = scmp.eq.s32.totalorder %s28, 1
      %p151 = por %p149, %p150
      %p152 = scmp.ne.s32.totalorder %s143, %s144
      %p153 = scmp.eq.s32.totalorder %s28, 0
      %p154 = por %p152, %p153
      %p155 = scmp.ne.s32.totalorder %s143, %s144
      %p156 = scmp.eq.s32.totalorder %s29, 1
      %p157 = por %p155, %p156
      %p159 = scmp.ne.s32.totalorder %s144, %s158
      %p160 = scmp.eq.s32.totalorder %s29, 0
      %p161 = por %p159, %p160
      %s163 = sadd.s32 %s162, 1
      %p166 = scmp.eq.s32.totalorder %s23, 1
      %p167 = scmp.ne.s32.totalorder %s162, %s164
      %p168 = scmp.eq.s32.totalorder %s23, 0
      %p169 = por %p167, %p168
      %p170 = scmp.ne.s32.totalorder %s162, %s164
      %p171 = scmp.eq.s32.totalorder %s28, 1
      %p172 = por %p170, %p171
      %p173 = scmp.ne.s32.totalorder %s164, %s165
      %p174 = scmp.eq.s32.totalorder %s28, 0
      %p175 = por %p173, %p174
      %p176 = scmp.ne.s32.totalorder %s164, %s165
      %p177 = scmp.eq.s32.totalorder %s29, 1
      %p178 = por %p176, %p177
      %p180 = scmp.ne.s32.totalorder %s165, %s179
      %p181 = scmp.eq.s32.totalorder %s29, 0
      %p182 = por %p180, %p181
      %s184 = sadd.s32 %s183, 1
      %p187 = scmp.eq.s32.totalorder %s23, 1
      %p188 = scmp.ne.s32.totalorder %s183, %s185
      %p189 = scmp.eq.s32.totalorder %s23, 0
      %p190 = por %p188, %p189
      %p191 = scmp.ne.s32.totalorder %s183, %s185
      %p192 = scmp.eq.s32.totalorder %s28, 1
      %p193 = por %p191, %p192
      %p194 = scmp.ne.s32.totalorder %s185, %s186
      %p195 = scmp.eq.s32.totalorder %s28, 0
      %p196 = por %p194, %p195
      %p197 = scmp.ne.s32.totalorder %s185, %s186
      %p198 = scmp.eq.s32.totalorder %s29, 1
      %p199 = por %p197, %p198
      %p201 = scmp.ne.s32.totalorder %s186, %s200
      %p202 = scmp.eq.s32.totalorder %s29, 0
      %p203 = por %p201, %p202
      %s205 = sadd.s32 %s204, 1
      %p208 = scmp.eq.s32.totalorder %s23, 1
      %p209 = scmp.ne.s32.totalorder %s204, %s206
      %p210 = scmp.eq.s32.totalorder %s23, 0
      %p211 = por %p209, %p210
      %p212 = scmp.ne.s32.totalorder %s204, %s206
      %p213 = scmp.eq.s32.totalorder %s28, 1
      %p214 = por %p212, %p213
      %p215 = scmp.ne.s32.totalorder %s206, %s207
      %p216 = scmp.eq.s32.totalorder %s28, 0
      %p217 = por %p215, %p216
      %p218 = scmp.ne.s32.totalorder %s206, %s207
      %p219 = scmp.eq.s32.totalorder %s29, 1
      %p220 = por %p218, %p219
      %p222 = scmp.ne.s32.totalorder %s207, %s221
      %p223 = scmp.eq.s32.totalorder %s29, 0
      %p224 = por %p222, %p223
      %s225 = ssub.s32 %s23, %s30
      %p226 = scmp.eq.s32.totalorder %s225, 0
      %s228 = sadd.s32 %s227, 1
      %s229 = scalar_select %p226, %s227, %s228
      %p232 = pneg %p226
      %p233 = scmp.eq.s32.totalorder %s23, 1
      %p234 = por %p232, %p233
      %p235 = scmp.ne.s32.totalorder %s227, %s230
      %p236 = scmp.eq.s32.totalorder %s23, 0
      %p237 = por %p235, %p236
      %p238 = scmp.ne.s32.totalorder %s227, %s230
      %p239 = scmp.eq.s32.totalorder %s28, 1
      %p240 = por %p238, %p239
      %p241 = scmp.ne.s32.totalorder %s230, %s231
      %p242 = scmp.eq.s32.totalorder %s28, 0
      %p243 = por %p241, %p242
      %p244 = scmp.ne.s32.totalorder %s230, %s231
      %p245 = scmp.eq.s32.totalorder %s29, 1
      %p246 = por %p244, %p245
      %p248 = scmp.ne.s32.totalorder %s231, %s247
      %p249 = scmp.eq.s32.totalorder %s29, 0
      %p250 = por %p248, %p249
      %p251 = scmp.le.s32.totalorder 1, %s23
      %p252 = scmp.lt.s32.totalorder %s23, 3
      %p253 = pnand %p251, %p252
      %p254 = pneg %p253
      // Predicated region
      $region9: #{tpu_custom_call.1} parent=5 // pred_check
        _
      $region10: #{tpu_custom_call.1} parent=5 // pred_check_branch
        %256 = sbr.rel (%p253) target = $region12
      $region11: #{tpu_custom_call.1} parent=5 // pred_region
        %s257 = ssub.s32 %s23, 1
        // Predicated region
        $region13: #{tpu_custom_call.1} parent=11 // pred_check
          %p258 = pneg %p70
        $region14: #{tpu_custom_call.1} parent=11 // pred_check_branch
          %260 = sbr.rel (%p258) target = $region16
        $region15: #{tpu_custom_call.1} parent=11 // pred_region
          %s262 = ssub.s32 512, 512
          %263 = vsyncadd [#allocation6], %s262
          %s264 = sshll.u32 [#allocation5], 4
          %s265 = int_to_ptr.vmem [resolvable:$true] %s264
          %270 = dma.hbm_to_vmem [thread:$0]  %s1, 512, %s265, [#allocation6], 128, 128, 8
        $region16: #{tpu_custom_call.1} parent=11 // pred_fallthru
          _
        // Predicated region
        $region17: #{tpu_custom_call.1} parent=11 // pred_check
          %p271 = pneg %p91
        $region18: #{tpu_custom_call.1} parent=11 // pred_check_branch
          %273 = sbr.rel (%p271) target = $region20
        $region19: #{tpu_custom_call.1} parent=11 // pred_region
          _
        $region20: #{tpu_custom_call.1} parent=11 // pred_fallthru
          _
        // Predicated region
        $region21: #{tpu_custom_call.1} parent=11 // pred_check
          %p274 = pneg %p112
        $region22: #{tpu_custom_call.1} parent=11 // pred_check_branch
          %276 = sbr.rel (%p274) target = $region24
        $region23: #{tpu_custom_call.1} parent=11 // pred_region
          %s278 = ssub.s32 2048, 2048
          %279 = vsyncadd [#allocation6], %s278
          %s280 = sshll.u32 [#allocation7], 4
          %s281 = int_to_ptr.vmem [resolvable:$true] %s280
          %286 = dma.hbm_to_vmem [thread:$0]  %s3, 2048, %s281, [#allocation6], 64, 64, 4
        $region24: #{tpu_custom_call.1} parent=11 // pred_fallthru
          _
        // Predicated region
        $region25: #{tpu_custom_call.1} parent=11 // pred_check
          %p287 = pneg %p133
        $region26: #{tpu_custom_call.1} parent=11 // pred_check_branch
          %289 = sbr.rel (%p287) target = $region28
        $region27: #{tpu_custom_call.1} parent=11 // pred_region
          _
        $region28: #{tpu_custom_call.1} parent=11 // pred_fallthru
          _
        // Predicated region
        $region29: #{tpu_custom_call.1} parent=11 // pred_check
          %p290 = pneg %p154
        $region30: #{tpu_custom_call.1} parent=11 // pred_check_branch
          %292 = sbr.rel (%p290) target = $region32
        $region31: #{tpu_custom_call.1} parent=11 // pred_region
          %s294 = ssub.s32 1024, 1024
          %295 = vsyncadd [#allocation9], %s294
          %s296 = sshll.u32 [#allocation8], 4
          %s297 = int_to_ptr.vmem [resolvable:$true] %s296
          %302 = dma.hbm_to_vmem [thread:$0]  %s5, 1024, %s297, [#allocation9], 64, 64, 4
        $region32: #{tpu_custom_call.1} parent=11 // pred_fallthru
          _
        // Predicated region
        $region33: #{tpu_custom_call.1} parent=11 // pred_check
          %p303 = pneg %p175
        $region34: #{tpu_custom_call.1} parent=11 // pred_check_branch
          %305 = sbr.rel (%p303) target = $region36
        $region35: #{tpu_custom_call.1} parent=11 // pred_region
          _
        $region36: #{tpu_custom_call.1} parent=11 // pred_fallthru
          _
        // Predicated region
        $region37: #{tpu_custom_call.1} parent=11 // pred_check
          %p306 = pneg %p196
        $region38: #{tpu_custom_call.1} parent=11 // pred_check_branch
          %308 = sbr.rel (%p306) target = $region40
        $region39: #{tpu_custom_call.1} parent=11 // pred_region
          %s310 = ssub.s32 1024, 1024
          %311 = vsyncadd [#allocation9], %s310
          %s312 = sshll.u32 [#allocation10], 4
          %s313 = int_to_ptr.vmem [resolvable:$true] %s312
          %318 = dma.hbm_to_vmem [thread:$0]  %s7, 1024, %s313, [#allocation9], 64, 64, 4
        $region40: #{tpu_custom_call.1} parent=11 // pred_fallthru
          _
        // Predicated region
        $region41: #{tpu_custom_call.1} parent=11 // pred_check
          %p319 = pneg %p217
        $region42: #{tpu_custom_call.1} parent=11 // pred_check_branch
          %321 = sbr.rel (%p319) target = $region44
        $region43: #{tpu_custom_call.1} parent=11 // pred_region
          _
        $region44: #{tpu_custom_call.1} parent=11 // pred_fallthru
          _
      $region12: #{tpu_custom_call.1} parent=5 // pred_fallthru
        _
      %p322 = scmp.lt.s32.totalorder %s23, 2
      // Predicated region
      $region45: #{tpu_custom_call.1} parent=5 // pred_check
        %p323 = pneg %p322
      $region46: #{tpu_custom_call.1} parent=5 // pred_check_branch
        %325 = sbr.rel (%p323) target = $region48
      $region47: #{tpu_custom_call.1} parent=5 // pred_region
        // Predicated region
        $region49: #{tpu_custom_call.1} parent=47 // pred_check
          %p326 = pneg %p43
        $region50: #{tpu_custom_call.1} parent=47 // pred_check_branch
          %328 = sbr.rel (%p326) target = $region52
        $region51: #{tpu_custom_call.1} parent=47 // pred_region
          %s329 = sand.u32 %s33, 1
          %s330 = scalar_lea.sflag [#allocation3], %s329
          %s331 = sand.u32 %s33, 1
          %s332 = smul.addr %s331, 8
          %s333 = scalar_lea.vmem [#allocation2], %s332
          %s335 = ssub.s32 128, 128
          %336 = vsyncadd %s330, %s335
          %s337 = smul.addr %s23, 128
          %s338 = scalar_lea.hbm %s0, %s337
          %s340 = sshll.u32 %s333, 4
          %s341 = int_to_ptr.vmem [resolvable:$true] %s340
          %343 = dma.hbm_to_vmem [thread:$0]  %s338, 128, %s341, %s330
        $region52: #{tpu_custom_call.1} parent=47 // pred_fallthru
          _
      $region48: #{tpu_custom_call.1} parent=5 // pred_fallthru
        _
      %p344 = scmp.le.s32.totalorder 1, %s23
      %p345 = scmp.lt.s32.totalorder %s23, 3
      %p346 = pnand %p344, %p345
      %p347 = pneg %p346
      // Predicated region
      $region53: #{tpu_custom_call.1} parent=5 // pred_check
        _
      $region54: #{tpu_custom_call.1} parent=5 // pred_check_branch
        %349 = sbr.rel (%p346) target = $region56
      $region55: #{tpu_custom_call.1} parent=5 // pred_region
        %s350 = ssub.s32 %s23, 1
        %s351 = sand.u32 %s36, 1
        %s352 = scalar_lea.sflag [#allocation3], %s351
        %s353 = sand.u32 %s36, 1
        %s354 = smul.addr %s353, 8
        %s355 = scalar_lea.vmem [#allocation2], %s354
        // Predicated region
        $region57: #{tpu_custom_call.1} parent=55 // pred_check
          %p356 = pneg %p49
        $region58: #{tpu_custom_call.1} parent=55 // pred_check_branch
          %358 = sbr.rel (%p356) target = $region60
        $region59: #{tpu_custom_call.1} parent=55 // pred_region
          %359 = dma.done %s352, 128
        $region60: #{tpu_custom_call.1} parent=55 // pred_fallthru
          _
        // Predicated region
        $region61: #{tpu_custom_call.1} parent=55 // pred_check
          %p360 = pneg %p70
        $region62: #{tpu_custom_call.1} parent=55 // pred_check_branch
          %362 = sbr.rel (%p360) target = $region64
        $region63: #{tpu_custom_call.1} parent=55 // pred_region
          %363 = dma.done [#allocation6], 512
        $region64: #{tpu_custom_call.1} parent=55 // pred_fallthru
          _
        // Predicated region
        $region65: #{tpu_custom_call.1} parent=55 // pred_check
          %p364 = pneg %p112
        $region66: #{tpu_custom_call.1} parent=55 // pred_check_branch
          %366 = sbr.rel (%p364) target = $region68
        $region67: #{tpu_custom_call.1} parent=55 // pred_region
          %367 = dma.done [#allocation6], 2048
        $region68: #{tpu_custom_call.1} parent=55 // pred_fallthru
          _
        // Predicated region
        $region69: #{tpu_custom_call.1} parent=55 // pred_check
          %p368 = pneg %p154
        $region70: #{tpu_custom_call.1} parent=55 // pred_check_branch
          %370 = sbr.rel (%p368) target = $region72
        $region71: #{tpu_custom_call.1} parent=55 // pred_region
          %371 = dma.done [#allocation9], 1024
        $region72: #{tpu_custom_call.1} parent=55 // pred_fallthru
          _
        // Predicated region
        $region73: #{tpu_custom_call.1} parent=55 // pred_check
          %p372 = pneg %p196
        $region74: #{tpu_custom_call.1} parent=55 // pred_check_branch
          %374 = sbr.rel (%p372) target = $region76
        $region75: #{tpu_custom_call.1} parent=55 // pred_region
          %375 = dma.done [#allocation9], 1024
        $region76: #{tpu_custom_call.1} parent=55 // pred_fallthru
          _
        %s376 = sand.u32 %s36, 1
        %s377 = scalar_lea.sflag [#allocation3], %s376
        %s378 = sand.u32 %s36, 1
        %s379 = smul.addr %s378, 8
        %s380 = scalar_lea.vmem [#allocation2], %s379
        %p381 = pneg %p49
        %p382 = pneg %p46
        %p383 = pneg %p70
        %p384 = pneg %p67
        %p385 = pneg %p91
        %p386 = pneg %p88
        %p387 = pneg %p112
        %p388 = pneg %p109
        %p389 = pneg %p133
        %p390 = pneg %p130
        %p391 = pneg %p154
        %p392 = pneg %p151
        %p393 = pneg %p175
        %p394 = pneg %p172
        %p395 = pneg %p196
        %p396 = pneg %p193
        %p397 = pneg %p217
        %p398 = pneg %p214
        %p399 = pneg %p243
        %p400 = pneg %p240
        %s401 = sand.u32 %s230, 1
        %s402 = scalar_lea.sflag [#allocation4], %s401
        %s403 = sand.u32 %s230, 1
        %s404 = smul.addr %s403, 8
        %s405 = scalar_lea.vmem [#allocation11], %s404
        %v407 = vld [vmem:[%s355] sm:$0xff]
        %v408 = vpack.c.bf16 %v407, %v407
        %v409 = vld [vmem:[#allocation5] sm:$0xff]
        %v410 = vld [vmem:[#allocation5 + $0x8] sm:$0xff]
        %v411 = vld [vmem:[#allocation5 + $0x10] sm:$0xff]
        %v412 = vld [vmem:[#allocation5 + $0x18] sm:$0xff]
        %v413 = vld [vmem:[%s2] sm:$0x3]
        %v415 = vlaneseq
        %v416 = vshrl.u32 %v415, 7
        %v417 = vsub.s32 0, %v416
        %v418 = vrot.slane %v413, %v417
        %v419 = vlaneseq
        %v420 = vshrl.u32 %v419, 7
        %v421 = vsub.s32 1, %v420
        %v422 = vrot.slane %v413, %v421
        %v429 = vunpack.c.l.b16 %v409
        %v430 = vunpack.c.h.b16 %v409
        %v431 = vunpack.c.l.b16 %v410
        %v432 = vunpack.c.h.b16 %v410
        %v433 = vunpack.c.l.b16 %v411
        %v434 = vunpack.c.h.b16 %v411
        %v435 = vunpack.c.l.b16 %v412
        %v436 = vunpack.c.h.b16 %v412
        %v437 = vpack.c.b16 %v431, %v429
        %v438 = vpack.c.b16 %v432, %v430
        %v439 = vpack.c.b16 %v435, %v433
        %v440 = vpack.c.b16 %v436, %v434
        %vm445 = vcmask 261120
        %v447 = vsel %vm445, %v408, 0
        %449 = vmatprep.subr.bf16.mxu0 %v438
        %450 = vmatpush1.bf16.msra.mxu0 %v437
        %451 = vmatprep.subr.bf16.mxu0 %v440
        %452 = vmatpush1.bf16.msra.mxu0 %v439
        %453 = vmatprep.subr.bf16.mxu0 0
        %454 = vmatpush1.bf16.msra.mxu0 0
        %455 = vmatprep.subr.bf16.mxu0 0
        %456 = vmatpush1.bf16.msra.mxu0 0
        %457 = vmatprep.subr.bf16.mxu0 0
        %458 = vmatpush1.bf16.msra.mxu0 0
        %459 = vmatprep.subr.bf16.mxu0 0
        %460 = vmatpush1.bf16.msra.mxu0 0
        %461 = vmatprep.subr.bf16.mxu0 0
        %462 = vmatpush1.bf16.msra.mxu0 0
        %463 = vmatprep.subr.bf16.mxu0 0
        %464 = vmatpush1.bf16.msra.mxu0 0
        %465 = vmatprep.subr.bf16.mxu0 0
        %466 = vmatpush1.bf16.msra.mxu0 0
        %467 = vmatprep.subr.bf16.mxu0 0
        %468 = vmatpush1.bf16.msra.mxu0 0
        %469 = vmatprep.subr.bf16.mxu0 0
        %470 = vmatpush1.bf16.msra.mxu0 0
        %471 = vmatprep.subr.bf16.mxu0 0
        %472 = vmatpush1.bf16.msra.mxu0 0
        %473 = vmatprep.subr.bf16.mxu0 0
        %474 = vmatpush1.bf16.msra.mxu0 0
        %475 = vmatprep.subr.bf16.mxu0 0
        %476 = vmatpush1.bf16.msra.mxu0 0
        %477 = vmatprep.subr.bf16.mxu0 0
        %478 = vmatpush1.bf16.msra.mxu0 0
        %479 = vmatprep.subr.bf16.mxu0 0
        %480 = vmatpush1.bf16.msra.mxu0 0
        %481 = vmatprep.mubr.bf16.mxu0 0
        %482 = vmatmul.mubr.bf16.gmra.mrb[0].mxu0 %v447
        %v483 = vpop.f32.mrb[0].mxu0
        %v484 = vadd.f32 %v418, %v483
        %v485 = vpop.f32.mrb[0].mxu0
        %v486 = vadd.f32 %v422, %v485
        %v487 = vpop.f32.mrb[0].mxu0
        %v488 = vpop.f32.mrb[0].mxu0
        %489 = vdwg.mxu0
        %v490 = vmax.f32 %v484, 0.0
        %v491 = vmax.f32 %v486, 0.0
        %v492 = vpack.c.bf16 %v490, %v490
        %v493 = vpack.c.bf16 %v491, %v491
        %v494 = vld [vmem:[#allocation7] sm:$0xf]
        %v495 = vld [vmem:[#allocation7 + $0x4] sm:$0xf]
        %v496 = vld [vmem:[#allocation7 + $0x8] sm:$0xf]
        %v497 = vld [vmem:[#allocation7 + $0xc] sm:$0xf]
        %v498 = vld [vmem:[#allocation7 + $0x10] sm:$0xf]
        %v499 = vld [vmem:[#allocation7 + $0x14] sm:$0xf]
        %v500 = vld [vmem:[#allocation7 + $0x18] sm:$0xf]
        %v501 = vld [vmem:[#allocation7 + $0x1c] sm:$0xf]
        %v502 = vld [vmem:[#allocation7 + $0x20] sm:$0xf]
        %v503 = vld [vmem:[#allocation7 + $0x24] sm:$0xf]
        %v504 = vld [vmem:[#allocation7 + $0x28] sm:$0xf]
        %v505 = vld [vmem:[#allocation7 + $0x2c] sm:$0xf]
        %v506 = vld [vmem:[#allocation7 + $0x30] sm:$0xf]
        %v507 = vld [vmem:[#allocation7 + $0x34] sm:$0xf]
        %v508 = vld [vmem:[#allocation7 + $0x38] sm:$0xf]
        %v509 = vld [vmem:[#allocation7 + $0x3c] sm:$0xf]
        %v510 = vld [vmem:[#allocation7 + $0x40] sm:$0xf]
        %v511 = vld [vmem:[#allocation7 + $0x44] sm:$0xf]
        %v512 = vld [vmem:[#allocation7 + $0x48] sm:$0xf]
        %v513 = vld [vmem:[#allocation7 + $0x4c] sm:$0xf]
        %v514 = vld [vmem:[#allocation7 + $0x50] sm:$0xf]
        %v515 = vld [vmem:[#allocation7 + $0x54] sm:$0xf]
        %v516 = vld [vmem:[#allocation7 + $0x58] sm:$0xf]
        %v517 = vld [vmem:[#allocation7 + $0x5c] sm:$0xf]
        %v518 = vld [vmem:[#allocation7 + $0x60] sm:$0xf]
        %v519 = vld [vmem:[#allocation7 + $0x64] sm:$0xf]
        %v520 = vld [vmem:[#allocation7 + $0x68] sm:$0xf]
        %v521 = vld [vmem:[#allocation7 + $0x6c] sm:$0xf]
        %v522 = vld [vmem:[#allocation7 + $0x70] sm:$0xf]
        %v523 = vld [vmem:[#allocation7 + $0x74] sm:$0xf]
        %v524 = vld [vmem:[#allocation7 + $0x78] sm:$0xf]
        %v525 = vld [vmem:[#allocation7 + $0x7c] sm:$0xf]
        %v526 = vld [vmem:[%s4] sm:$0x1]
        %v528 = vlaneseq
        %v529 = vshrl.u32 %v528, 7
        %v530 = vsub.s32 0, %v529
        %v531 = vrot.slane %v526, %v530
        %v565 = vunpack.c.l.b16 %v494
        %v566 = vunpack.c.l.b16 %v495
        %v567 = vunpack.c.l.b16 %v496
        %v568 = vunpack.c.l.b16 %v497
        %v569 = vunpack.c.l.b16 %v498
        %v570 = vunpack.c.l.b16 %v499
        %v571 = vunpack.c.l.b16 %v500
        %v572 = vunpack.c.l.b16 %v501
        %v573 = vunpack.c.l.b16 %v502
        %v574 = vunpack.c.l.b16 %v503
        %v575 = vunpack.c.l.b16 %v504
        %v576 = vunpack.c.l.b16 %v505
        %v577 = vunpack.c.l.b16 %v506
        %v578 = vunpack.c.l.b16 %v507
        %v579 = vunpack.c.l.b16 %v508
        %v580 = vunpack.c.l.b16 %v509
        %v581 = vunpack.c.l.b16 %v510
        %v582 = vunpack.c.l.b16 %v511
        %v583 = vunpack.c.l.b16 %v512
        %v584 = vunpack.c.l.b16 %v513
        %v585 = vunpack.c.l.b16 %v514
        %v586 = vunpack.c.l.b16 %v515
        %v587 = vunpack.c.l.b16 %v516
        %v588 = vunpack.c.l.b16 %v517
        %v589 = vunpack.c.l.b16 %v518
        %v590 = vunpack.c.l.b16 %v519
        %v591 = vunpack.c.l.b16 %v520
        %v592 = vunpack.c.l.b16 %v521
        %v593 = vunpack.c.l.b16 %v522
        %v594 = vunpack.c.l.b16 %v523
        %v595 = vunpack.c.l.b16 %v524
        %v596 = vunpack.c.l.b16 %v525
        %v597 = vpack.c.b16 %v566, %v565
        %v598 = vpack.c.b16 %v568, %v567
        %v599 = vpack.c.b16 %v570, %v569
        %v600 = vpack.c.b16 %v572, %v571
        %v601 = vpack.c.b16 %v574, %v573
        %v602 = vpack.c.b16 %v576, %v575
        %v603 = vpack.c.b16 %v578, %v577
        %v604 = vpack.c.b16 %v580, %v579
        %v605 = vpack.c.b16 %v582, %v581
        %v606 = vpack.c.b16 %v584, %v583
        %v607 = vpack.c.b16 %v586, %v585
        %v608 = vpack.c.b16 %v588, %v587
        %v609 = vpack.c.b16 %v590, %v589
        %v610 = vpack.c.b16 %v592, %v591
        %v611 = vpack.c.b16 %v594, %v593
        %v612 = vpack.c.b16 %v596, %v595
        %629 = vmatprep.subr.bf16.mxu0 0
        %630 = vmatpush1.bf16.msra.mxu0 %v597
        %631 = vmatprep.subr.bf16.mxu0 0
        %632 = vmatpush1.bf16.msra.mxu0 %v598
        %633 = vmatprep.subr.bf16.mxu0 0
        %634 = vmatpush1.bf16.msra.mxu0 %v599
        %635 = vmatprep.subr.bf16.mxu0 0
        %636 = vmatpush1.bf16.msra.mxu0 %v600
        %637 = vmatprep.subr.bf16.mxu0 0
        %638 = vmatpush1.bf16.msra.mxu0 %v601
        %639 = vmatprep.subr.bf16.mxu0 0
        %640 = vmatpush1.bf16.msra.mxu0 %v602
        %641 = vmatprep.subr.bf16.mxu0 0
        %642 = vmatpush1.bf16.msra.mxu0 %v603
        %643 = vmatprep.subr.bf16.mxu0 0
        %644 = vmatpush1.bf16.msra.mxu0 %v604
        %645 = vmatprep.subr.bf16.mxu0 0
        %646 = vmatpush1.bf16.msra.mxu0 %v605
        %647 = vmatprep.subr.bf16.mxu0 0
        %648 = vmatpush1.bf16.msra.mxu0 %v606
        %649 = vmatprep.subr.bf16.mxu0 0
        %650 = vmatpush1.bf16.msra.mxu0 %v607
        %651 = vmatprep.subr.bf16.mxu0 0
        %652 = vmatpush1.bf16.msra.mxu0 %v608
        %653 = vmatprep.subr.bf16.mxu0 0
        %654 = vmatpush1.bf16.msra.mxu0 %v609
        %655 = vmatprep.subr.bf16.mxu0 0
        %656 = vmatpush1.bf16.msra.mxu0 %v610
        %657 = vmatprep.subr.bf16.mxu0 0
        %658 = vmatpush1.bf16.msra.mxu0 %v611
        %659 = vmatprep.subr.bf16.mxu0 0
        %660 = vmatpush1.bf16.msra.mxu0 %v612
        %661 = vmatprep.mubr.bf16.mxu0 %v493
        %662 = vmatmul.mubr.bf16.gmra.mrb[0].mxu0 %v492
        %v663 = vpop.f32.mrb[0].mxu0
        %v664 = vadd.f32 %v531, %v663
        %v665 = vpop.f32.mrb[0].mxu0
        %v666 = vpop.f32.mrb[0].mxu0
        %v667 = vpop.f32.mrb[0].mxu0
        %668 = vdwg.mxu0
        %v669 = vmax.f32 %v664, 0.0
        %v670 = vpack.c.bf16 %v669, %v669
        %v671 = vld [vmem:[#allocation8] sm:$0xf]
        %v672 = vld [vmem:[#allocation8 + $0x4] sm:$0xf]
        %v673 = vld [vmem:[#allocation8 + $0x8] sm:$0xf]
        %v674 = vld [vmem:[#allocation8 + $0xc] sm:$0xf]
        %v675 = vld [vmem:[#allocation8 + $0x10] sm:$0xf]
        %v676 = vld [vmem:[#allocation8 + $0x14] sm:$0xf]
        %v677 = vld [vmem:[#allocation8 + $0x18] sm:$0xf]
        %v678 = vld [vmem:[#allocation8 + $0x1c] sm:$0xf]
        %v679 = vld [vmem:[#allocation8 + $0x20] sm:$0xf]
        %v680 = vld [vmem:[#allocation8 + $0x24] sm:$0xf]
        %v681 = vld [vmem:[#allocation8 + $0x28] sm:$0xf]
        %v682 = vld [vmem:[#allocation8 + $0x2c] sm:$0xf]
        %v683 = vld [vmem:[#allocation8 + $0x30] sm:$0xf]
        %v684 = vld [vmem:[#allocation8 + $0x34] sm:$0xf]
        %v685 = vld [vmem:[#allocation8 + $0x38] sm:$0xf]
        %v686 = vld [vmem:[#allocation8 + $0x3c] sm:$0xf]
        %v687 = vld [vmem:[%s6] sm:$0x1]
        %v689 = vlaneseq
        %v690 = vshrl.u32 %v689, 7
        %v691 = vsub.s32 0, %v690
        %v692 = vrot.slane %v687, %v691
        %v710 = vunpack.c.l.b16 %v671
        %v711 = vunpack.c.l.b16 %v672
        %v712 = vunpack.c.l.b16 %v673
        %v713 = vunpack.c.l.b16 %v674
        %v714 = vunpack.c.l.b16 %v675
        %v715 = vunpack.c.l.b16 %v676
        %v716 = vunpack.c.l.b16 %v677
        %v717 = vunpack.c.l.b16 %v678
        %v718 = vunpack.c.l.b16 %v679
        %v719 = vunpack.c.l.b16 %v680
        %v720 = vunpack.c.l.b16 %v681
        %v721 = vunpack.c.l.b16 %v682
        %v722 = vunpack.c.l.b16 %v683
        %v723 = vunpack.c.l.b16 %v684
        %v724 = vunpack.c.l.b16 %v685
        %v725 = vunpack.c.l.b16 %v686
        %v726 = vpack.c.b16 %v711, %v710
        %v727 = vpack.c.b16 %v713, %v712
        %v728 = vpack.c.b16 %v715, %v714
        %v729 = vpack.c.b16 %v717, %v716
        %v730 = vpack.c.b16 %v719, %v718
        %v731 = vpack.c.b16 %v721, %v720
        %v732 = vpack.c.b16 %v723, %v722
        %v733 = vpack.c.b16 %v725, %v724
        %742 = vmatprep.subr.bf16.mxu0 0
        %743 = vmatpush1.bf16.msra.mxu0 %v726
        %744 = vmatprep.subr.bf16.mxu0 0
        %745 = vmatpush1.bf16.msra.mxu0 %v727
        %746 = vmatprep.subr.bf16.mxu0 0
        %747 = vmatpush1.bf16.msra.mxu0 %v728
        %748 = vmatprep.subr.bf16.mxu0 0
        %749 = vmatpush1.bf16.msra.mxu0 %v729
        %750 = vmatprep.subr.bf16.mxu0 0
        %751 = vmatpush1.bf16.msra.mxu0 %v730
        %752 = vmatprep.subr.bf16.mxu0 0
        %753 = vmatpush1.bf16.msra.mxu0 %v731
        %754 = vmatprep.subr.bf16.mxu0 0
        %755 = vmatpush1.bf16.msra.mxu0 %v732
        %756 = vmatprep.subr.bf16.mxu0 0
        %757 = vmatpush1.bf16.msra.mxu0 %v733
        %758 = vmatprep.subr.bf16.mxu0 0
        %759 = vmatpush1.bf16.msra.mxu0 0
        %760 = vmatprep.subr.bf16.mxu0 0
        %761 = vmatpush1.bf16.msra.mxu0 0
        %762 = vmatprep.subr.bf16.mxu0 0
        %763 = vmatpush1.bf16.msra.mxu0 0
        %764 = vmatprep.subr.bf16.mxu0 0
        %765 = vmatpush1.bf16.msra.mxu0 0
        %766 = vmatprep.subr.bf16.mxu0 0
        %767 = vmatpush1.bf16.msra.mxu0 0
        %768 = vmatprep.subr.bf16.mxu0 0
        %769 = vmatpush1.bf16.msra.mxu0 0
        %770 = vmatprep.subr.bf16.mxu0 0
        %771 = vmatpush1.bf16.msra.mxu0 0
        %772 = vmatprep.subr.bf16.mxu0 0
        %773 = vmatpush1.bf16.msra.mxu0 0
        %774 = vmatprep.mubr.bf16.mxu0 0
        %775 = vmatmul.mubr.bf16.gmra.mrb[0].mxu0 %v670
        %v776 = vpop.f32.mrb[0].mxu0
        %v777 = vadd.f32 %v692, %v776
        %v778 = vpop.f32.mrb[0].mxu0
        %v779 = vpop.f32.mrb[0].mxu0
        %v780 = vpop.f32.mrb[0].mxu0
        %781 = vdwg.mxu0
        %v782 = vmax.f32 %v777, 0.0
        %v783 = vpack.c.bf16 %v782, %v782
        %v784 = vld [vmem:[#allocation10] sm:$0xf]
        %v785 = vld [vmem:[#allocation10 + $0x4] sm:$0xf]
        %v786 = vld [vmem:[#allocation10 + $0x8] sm:$0xf]
        %v787 = vld [vmem:[#allocation10 + $0xc] sm:$0xf]
        %v788 = vld [vmem:[#allocation10 + $0x10] sm:$0xf]
        %v789 = vld [vmem:[#allocation10 + $0x14] sm:$0xf]
        %v790 = vld [vmem:[#allocation10 + $0x18] sm:$0xf]
        %v791 = vld [vmem:[#allocation10 + $0x1c] sm:$0xf]
        %v792 = vld [vmem:[#allocation10 + $0x20] sm:$0xf]
        %v793 = vld [vmem:[#allocation10 + $0x24] sm:$0xf]
        %v794 = vld [vmem:[#allocation10 + $0x28] sm:$0xf]
        %v795 = vld [vmem:[#allocation10 + $0x2c] sm:$0xf]
        %v796 = vld [vmem:[#allocation10 + $0x30] sm:$0xf]
        %v797 = vld [vmem:[#allocation10 + $0x34] sm:$0xf]
        %v798 = vld [vmem:[#allocation10 + $0x38] sm:$0xf]
        %v799 = vld [vmem:[#allocation10 + $0x3c] sm:$0xf]
        %v800 = vld [vmem:[%s8] sm:$0x1]
        %v802 = vlaneseq
        %v803 = vshrl.u32 %v802, 7
        %v804 = vsub.s32 0, %v803
        %v805 = vrot.slane %v800, %v804
        %v823 = vunpack.c.l.b16 %v784
        %v824 = vunpack.c.l.b16 %v785
        %v825 = vunpack.c.l.b16 %v786
        %v826 = vunpack.c.l.b16 %v787
        %v827 = vunpack.c.l.b16 %v788
        %v828 = vunpack.c.l.b16 %v789
        %v829 = vunpack.c.l.b16 %v790
        %v830 = vunpack.c.l.b16 %v791
        %v831 = vunpack.c.l.b16 %v792
        %v832 = vunpack.c.l.b16 %v793
        %v833 = vunpack.c.l.b16 %v794
        %v834 = vunpack.c.l.b16 %v795
        %v835 = vunpack.c.l.b16 %v796
        %v836 = vunpack.c.l.b16 %v797
        %v837 = vunpack.c.l.b16 %v798
        %v838 = vunpack.c.l.b16 %v799
        %v839 = vpack.c.b16 %v824, %v823
        %v840 = vpack.c.b16 %v826, %v825
        %v841 = vpack.c.b16 %v828, %v827
        %v842 = vpack.c.b16 %v830, %v829
        %v843 = vpack.c.b16 %v832, %v831
        %v844 = vpack.c.b16 %v834, %v833
        %v845 = vpack.c.b16 %v836, %v835
        %v846 = vpack.c.b16 %v838, %v837
        %855 = vmatprep.subr.bf16.mxu0 0
        %856 = vmatpush1.bf16.msra.mxu0 %v839
        %857 = vmatprep.subr.bf16.mxu0 0
        %858 = vmatpush1.bf16.msra.mxu0 %v840
        %859 = vmatprep.subr.bf16.mxu0 0
        %860 = vmatpush1.bf16.msra.mxu0 %v841
        %861 = vmatprep.subr.bf16.mxu0 0
        %862 = vmatpush1.bf16.msra.mxu0 %v842
        %863 = vmatprep.subr.bf16.mxu0 0
        %864 = vmatpush1.bf16.msra.mxu0 %v843
        %865 = vmatprep.subr.bf16.mxu0 0
        %866 = vmatpush1.bf16.msra.mxu0 %v844
        %867 = vmatprep.subr.bf16.mxu0 0
        %868 = vmatpush1.bf16.msra.mxu0 %v845
        %869 = vmatprep.subr.bf16.mxu0 0
        %870 = vmatpush1.bf16.msra.mxu0 %v846
        %871 = vmatprep.subr.bf16.mxu0 0
        %872 = vmatpush1.bf16.msra.mxu0 0
        %873 = vmatprep.subr.bf16.mxu0 0
        %874 = vmatpush1.bf16.msra.mxu0 0
        %875 = vmatprep.subr.bf16.mxu0 0
        %876 = vmatpush1.bf16.msra.mxu0 0
        %877 = vmatprep.subr.bf16.mxu0 0
        %878 = vmatpush1.bf16.msra.mxu0 0
        %879 = vmatprep.subr.bf16.mxu0 0
        %880 = vmatpush1.bf16.msra.mxu0 0
        %881 = vmatprep.subr.bf16.mxu0 0
        %882 = vmatpush1.bf16.msra.mxu0 0
        %883 = vmatprep.subr.bf16.mxu0 0
        %884 = vmatpush1.bf16.msra.mxu0 0
        %885 = vmatprep.subr.bf16.mxu0 0
        %886 = vmatpush1.bf16.msra.mxu0 0
        %887 = vmatprep.mubr.bf16.mxu0 0
        %888 = vmatmul.mubr.bf16.gmra.mrb[0].mxu0 %v783
        %v889 = vpop.f32.mrb[0].mxu0
        %v890 = vadd.f32 %v805, %v889
        %v891 = vpop.f32.mrb[0].mxu0
        %v892 = vpop.f32.mrb[0].mxu0
        %v893 = vpop.f32.mrb[0].mxu0
        %894 = vdwg.mxu0
        %vm895 = vcmask 80896
        %896 = vst.msk [vmem:[%s405] sm:$0xff] %vm895, %v890
        %s897 = sand.u32 %s230, 1
        %s898 = scalar_lea.sflag [#allocation4], %s897
        %s899 = sand.u32 %s230, 1
        %s900 = smul.addr %s899, 8
        %s901 = scalar_lea.vmem [#allocation11], %s900
        // Predicated region
        $region77: #{tpu_custom_call.1} parent=55 // pred_check
          %p902 = pneg %p240
        $region78: #{tpu_custom_call.1} parent=55 // pred_check_branch
          %904 = sbr.rel (%p902) target = $region80
        $region79: #{tpu_custom_call.1} parent=55 // pred_region
          %s906 = ssub.s32 128, 128
          %907 = vsyncadd %s898, %s906
          %s908 = smul.addr %s28, 128
          %s909 = scalar_lea.hbm %s9, %s908
          %s911 = sshll.u32 %s901, 4
          %s912 = int_to_ptr.vmem [resolvable:$true] %s911
          %914 = dma.vmem_to_hbm [thread:$0]  %s912, 128, %s909, %s898
        $region80: #{tpu_custom_call.1} parent=55 // pred_fallthru
          _
      $region56: #{tpu_custom_call.1} parent=5 // pred_fallthru
        _
      %p915 = scmp.le.s32.totalorder 2, %s23
      // Predicated region
      $region81: #{tpu_custom_call.1} parent=5 // pred_check
        %p916 = pneg %p915
      $region82: #{tpu_custom_call.1} parent=5 // pred_check_branch
        %918 = sbr.rel (%p916) target = $region84
      $region83: #{tpu_custom_call.1} parent=5 // pred_region
        %s919 = ssub.s32 %s23, 2
        // Predicated region
        $region85: #{tpu_custom_call.1} parent=83 // pred_check
          %p920 = pneg %p246
        $region86: #{tpu_custom_call.1} parent=83 // pred_check_branch
          %922 = sbr.rel (%p920) target = $region88
        $region87: #{tpu_custom_call.1} parent=83 // pred_region
          %s923 = sand.u32 %s231, 1
          %s924 = scalar_lea.sflag [#allocation4], %s923
          %s925 = sand.u32 %s231, 1
          %s926 = smul.addr %s925, 8
          %s927 = scalar_lea.vmem [#allocation11], %s926
          %928 = dma.done %s924, 128
        $region88: #{tpu_custom_call.1} parent=83 // pred_fallthru
          _
      $region84: #{tpu_custom_call.1} parent=5 // pred_fallthru
        _
    $region6: #{tpu_custom_call.1} parent=1 // loop_footer
      %s27 = sadd.s32 1, %s23
    $region7: #{tpu_custom_call.1} parent=1 // loop_footer_branch
      %22 = sbr.rel target = $region3
    $region8: #{tpu_custom_call.1} parent=1 // loop_exit
      _
    %929 = vsyncpa [#allocation3], 1
    %s930 = scalar_lea.sflag [#allocation3], 1
    %931 = vsyncpa %s930, 1
    %932 = vsyncpa [#allocation6], 1
    %933 = vsyncpa [#allocation9], 1
    %934 = vsyncpa [#allocation4], 1
    %s935 = scalar_lea.sflag [#allocation4], 1
    %936 = vsyncpa %s935, 1

</llo_original>
